<compile_context>
chip_gen: v7x
topology: tpu7x:2x2x1
jax: 0.10.0
libtpu: 0.0.40
codegen_flags: <defaults>
</compile_context>

<pallas_src>
import jax
import jax.numpy as jnp
from jax.experimental import pallas as pl
from jax.experimental.pallas import tpu as pltpu


def _round_up(x, m):
    return (x + m - 1) // m * m


def _aa_embed_kernel(ids_ref, table_ref, out_ref):
    """One grid step embeds a tile of tokens.

    ids_ref:   (TILE, 1)        int32    token indices
    table_ref: (V_pad, D_total) float32  concatenated embedding table
    out_ref:   (TILE, D_total)  float32  embedded tokens
    """
    ids = ids_ref[...]                                   # (TILE, 1)
    tile = ids.shape[0]
    v_pad = table_ref.shape[0]
    # Build one-hot(ids) on the VPU, then gather all sub-embeddings at once
    # via a single MXU matmul (bit-exact vs. a gather: zeros add exactly).
    iota = jax.lax.broadcasted_iota(jnp.int32, (tile, v_pad), 1)
    onehot = (iota == ids).astype(jnp.float32)           # (TILE, V_pad)
    out_ref[...] = jnp.dot(onehot, table_ref[...],
                           preferred_element_type=jnp.float32)


def aa_embedding_pallas(x, table, total_dim, *, tile=512,
                        min_tokens_for_kernel=256):
    """x: int[B, S] token ids; table: float32[V_pad, total_dim]."""
    B, S = x.shape
    n = B * S
    v_pad, d_total = table.shape
    assert d_total == total_dim

    # For a handful of tokens a fused XLA gather beats any kernel launch.
    if n < min_tokens_for_kernel:
        return jnp.take(table, x.astype(jnp.int32), axis=0)

    # Keep the block legal (%8 on the sublane axis) for small n.
    tile = min(tile, _round_up(n, 8))
    num_tiles = pl.cdiv(n, tile)

    ids = x.reshape(n, 1).astype(jnp.int32)

    cost = pl.CostEstimate(
        flops=2 * n * v_pad * total_dim,
        transcendentals=0,
        bytes_accessed=n * 4 + v_pad * total_dim * 4 + n * total_dim * 4,
    )

    out = pl.pallas_call(
        _aa_embed_kernel,
        out_shape=jax.ShapeDtypeStruct((n, total_dim), jnp.float32),
        grid_spec=pltpu.PrefetchScalarGridSpec(
            num_scalar_prefetch=0,
            grid=(num_tiles,),
            in_specs=[
                pl.BlockSpec((tile, 1), lambda i: (i, 0)),          # token ids
                # Grid-invariant table block (constant index_map); ~11 KiB
                # here, so default double-buffering is irrelevant.
                # TODO(synk): for a large production table on v7x (64 MiB
                # VMEM), single-buffer it (pipeline_mode=pl.Buffered(1)) and
                # add a D grid axis so the resident table block stays bounded.
                pl.BlockSpec((v_pad, total_dim), lambda i: (0, 0)),
            ],
            out_specs=pl.BlockSpec((tile, total_dim), lambda i: (i, 0)),
        ),
        compiler_params=pltpu.CompilerParams(
            dimension_semantics=("parallel",)),
        cost_estimate=cost,
    )(ids, table)

    return out.reshape(B, S, total_dim)


def build_aa_embedding_params(encoding_dims, vocab_size, key):
    """Deterministically build the per-encoding tables and concatenate them,
    mirroring AAEmbedding.__init__ (learned + fixed encodings) + forward's cat.
    """
    tables = []
    for i, dim in enumerate(encoding_dims):
        k = jax.random.fold_in(key, i)
        # Synthetic stand-in for both the trained embeddings and the fixed
        # CSV-derived encodings (AA8 / PMBEC / VHSE / BLOSUM62).
        tables.append(jax.random.normal(k, (vocab_size, dim), jnp.float32))
    w = jnp.concatenate(tables, axis=-1)                  # [V, total_dim]
    total_dim = w.shape[1]

    # Pad the vocab axis to a sublane multiple; padded rows are zero and are
    # never selected by valid ids.  No feature-axis padding (see header).
    v_pad = _round_up(vocab_size, 8)
    w_pad = jnp.zeros((v_pad, total_dim), jnp.float32).at[:vocab_size].set(w)
    return w, w_pad, total_dim


if __name__ == "__main__":
    key = jax.random.PRNGKey(0)

    # encodings ~ "32+AA8+VHSE+BLOSUM62": learned 32-dim + fixed 20/8/25-dim.
    encoding_dims = (32, 20, 8, 25)          # total_dim = 85
    vocab_size = 25                          # len(AA1_FULL)
    # Protein-scale sequences so the grid has >= 2 parallel steps (feeds both
    # v7x TensorCores) while staying small: N = B*S = 1024 tokens, grid = 2.
    B, S = 4, 256

    w, w_pad, total_dim = build_aa_embedding_params(encoding_dims, vocab_size,
                                                    key)

    x = jax.random.randint(jax.random.fold_in(key, 100), (B, S), 0, vocab_size,
                           dtype=jnp.int32)

    y = aa_embedding_pallas(x, w_pad, total_dim)
    y = jax.block_until_ready(y)

    # Reference: plain-JAX gather + concat semantics (torch embedding lookups).
    y_ref = jnp.take(w, x.reshape(-1), axis=0).reshape(B, S, total_dim)

    assert y.shape == (B, S, total_dim), y.shape
    assert jnp.allclose(y, y_ref, atol=1e-5), "mismatch vs reference"
    print("KERNEL_OK")
</pallas_src>

<mosaic_0001>
module attributes {stable_mosaic.version = 11 : i64} {
  func.func @_aa_embed_kernel(%arg0: i32, %arg1: memref<512x1xi32, #tpu.memory_space<vmem>>, %arg2: memref<32x85xf32, #tpu.memory_space<vmem>>, %arg3: memref<512x85xf32, #tpu.memory_space<vmem>>) attributes {dimension_semantics = [#tpu.dimension_semantics<parallel>], iteration_bounds = array<i64: 2>, scalar_prefetch = 0 : i64, scratch_operands = 0 : i64, tpu.core_type = #tpu.core_type<tc>, window_params = [{transform_indices = @transform_0, window_bounds = array<i64: 512, 1>}, {pipeline_mode = #tpu.pipeline_mode<synchronous>, transform_indices = @transform_1, window_bounds = array<i64: 32, 85>}, {transform_indices = @transform_2, window_bounds = array<i64: 512, 85>}]} {
    %c0 = arith.constant 0 : index
    %c0_0 = arith.constant 0 : index
    %0 = vector.load %arg1[%c0, %c0_0] : memref<512x1xi32, #tpu.memory_space<vmem>>, vector<512x1xi32>
    %1 = tpu.iota {dimensions = array<i32: 1>} : vector<512x32xi32>
    %2 = vector.broadcast %0 : vector<512x1xi32> to vector<512x32xi32>
    %3 = arith.cmpi eq, %1, %2 : vector<512x32xi32>
    %4 = arith.extui %3 : vector<512x32xi1> to vector<512x32xi32>
    %5 = arith.sitofp %4 : vector<512x32xi32> to vector<512x32xf32>
    %c0_1 = arith.constant 0 : index
    %c0_2 = arith.constant 0 : index
    %6 = vector.load %arg2[%c0_1, %c0_2] : memref<32x85xf32, #tpu.memory_space<vmem>>, vector<32x85xf32>
    %cst = arith.constant dense<0.000000e+00> : vector<512x85xf32>
    %7 = tpu.matmul %5, %6, %cst {dimension_numbers = #tpu.dot_dimension_numbers<[1], [0], [0], [1], [0, 0, 1, 1], [], []>} : vector<512x32xf32>, vector<32x85xf32>, vector<512x85xf32> -> vector<512x85xf32>
    %c0_3 = arith.constant 0 : index
    %c0_4 = arith.constant 0 : index
    %8 = vector.load %arg3[%c0_3, %c0_4] : memref<512x85xf32, #tpu.memory_space<vmem>>, vector<512x85xf32>
    tpu.vector_store %arg3[%c0_3, %c0_4], %7 {strides = array<i32>} : memref<512x85xf32, #tpu.memory_space<vmem>>, vector<512x85xf32>,
    return
  }
  func.func @transform_0(%arg0: i32) -> (i32, i32) {
    %c0_i32 = arith.constant 0 : i32
    %c0_i32_0 = arith.constant 0 : i32
    return %arg0, %c0_i32 : i32, i32
  }
  func.func @transform_1(%arg0: i32) -> (i32, i32) {
    %c0_i32 = arith.constant 0 : i32
    %c0_i32_0 = arith.constant 0 : i32
    %c0_i32_1 = arith.constant 0 : i32
    return %c0_i32, %c0_i32_0 : i32, i32
  }
  func.func @transform_2(%arg0: i32) -> (i32, i32) {
    %c0_i32 = arith.constant 0 : i32
    %c0_i32_0 = arith.constant 0 : i32
    return %arg0, %c0_i32 : i32, i32
  }
}

</mosaic_0001>

<llo_original>
// kernel: tpu_custom_call.1
$region0: #{tpu_custom_call.1}
  #allocation0 [shape = 'u32[]', space=smem, size = 0x4, offset = 0x4, fixed_abs, tag = 'smem constant byte address 0x4 - core index']
  #allocation1 [shape = 'u32[144,128]{1,0:T(1,128)}', space=vmem, size = 0x12000, scoped, tag = 'internal scratch']
  %s0 = inlined_call_operand.vmem [shape: s32[1024,1], index: 0, kind: input, shape index: {}]
  %s1 = inlined_call_operand.vmem [shape: f32[32,85], index: 1, kind: input, shape index: {}]
  %s2 = inlined_call_operand.vmem [shape: f32[1024,85], index: 2, kind: output, shape index: {}]
  %s3 = sld [smem:[#allocation0]]
  $region41: #{tpu_custom_call.1} parent=0
    _
  %s5 = ssub.s32 1, %s3
  %s6 = scalar_select 0, %s5, %s3
  loop: start=0, step=1, limit=4
  $region2: #{tpu_custom_call.1} parent=0 // loop_pre_header
    _
  $region3: #{tpu_custom_call.1} parent=0 // loop_header
    %s8 = sphi 0, %s12
    %p9 = scmp.ge.s32.totalorder %s8, 4
    %s18 = sphi 0, %s20
    %s21 = sphi 0, %s18
    %s22 = sphi 0, %s21
    %s38 = sphi 0, %s22
    %s42 = sphi 0, %s42
    %s44 = sphi 0, %s42
    %s45 = sphi 0, %s44
    %s59 = sphi 0, %s45
    %s65 = sphi 0, %s67
    %s68 = sphi 0, %s65
    %s69 = sphi 0, %s68
    %s85 = sphi 0, %s69
  $region4: #{tpu_custom_call.1} parent=0 // loop_header_branch
    %11 = sbr.rel (%p9) target = $region8
  $region5: #{tpu_custom_call.1} parent=0 // loop_body
    %s13 = ssub.s32 %s8, 1
    %s14 = ssub.s32 %s8, 2
    %s15 = sadd.s32 %s8, 1
    %s16 = ssub.s32 %s8, %s15
    %p17 = scmp.eq.s32.totalorder %s16, 0
    %s19 = sadd.s32 %s18, 1
    %s20 = scalar_select %p17, %s18, %s19
    %p23 = pneg %p17
    %p24 = scmp.eq.s32.totalorder %s8, 1
    %p25 = por %p23, %p24
    %p26 = scmp.ne.s32.totalorder %s18, %s21
    %p27 = scmp.eq.s32.totalorder %s8, 0
    %p28 = por %p26, %p27
    %p29 = scmp.ne.s32.totalorder %s18, %s21
    %p30 = scmp.eq.s32.totalorder %s13, 1
    %p31 = por %p29, %p30
    %p32 = scmp.ne.s32.totalorder %s21, %s22
    %p33 = scmp.eq.s32.totalorder %s13, 0
    %p34 = por %p32, %p33
    %p35 = scmp.ne.s32.totalorder %s21, %s22
    %p36 = scmp.eq.s32.totalorder %s14, 1
    %p37 = por %p35, %p36
    %p39 = scmp.ne.s32.totalorder %s22, %s38
    %p40 = scmp.eq.s32.totalorder %s14, 0
    %p41 = por %p39, %p40
    %s43 = sadd.s32 %s42, 1
    %p46 = scmp.eq.s32.totalorder %s8, 1
    %p47 = scmp.ne.s32.totalorder %s42, %s44
    %p48 = scmp.eq.s32.totalorder %s8, 0
    %p49 = por %p47, %p48
    %p50 = scmp.ne.s32.totalorder %s42, %s44
    %p51 = scmp.eq.s32.totalorder %s13, 1
    %p52 = por %p50, %p51
    %p53 = scmp.ne.s32.totalorder %s44, %s45
    %p54 = scmp.eq.s32.totalorder %s13, 0
    %p55 = por %p53, %p54
    %p56 = scmp.ne.s32.totalorder %s44, %s45
    %p57 = scmp.eq.s32.totalorder %s14, 1
    %p58 = por %p56, %p57
    %p60 = scmp.ne.s32.totalorder %s45, %s59
    %p61 = scmp.eq.s32.totalorder %s14, 0
    %p62 = por %p60, %p61
    %s63 = ssub.s32 %s8, %s15
    %p64 = scmp.eq.s32.totalorder %s63, 0
    %s66 = sadd.s32 %s65, 1
    %s67 = scalar_select %p64, %s65, %s66
    %p70 = pneg %p64
    %p71 = scmp.eq.s32.totalorder %s8, 1
    %p72 = por %p70, %p71
    %p73 = scmp.ne.s32.totalorder %s65, %s68
    %p74 = scmp.eq.s32.totalorder %s8, 0
    %p75 = por %p73, %p74
    %p76 = scmp.ne.s32.totalorder %s65, %s68
    %p77 = scmp.eq.s32.totalorder %s13, 1
    %p78 = por %p76, %p77
    %p79 = scmp.ne.s32.totalorder %s68, %s69
    %p80 = scmp.eq.s32.totalorder %s13, 0
    %p81 = por %p79, %p80
    %p82 = scmp.ne.s32.totalorder %s68, %s69
    %p83 = scmp.eq.s32.totalorder %s14, 1
    %p84 = por %p82, %p83
    %p86 = scmp.ne.s32.totalorder %s69, %s85
    %p87 = scmp.eq.s32.totalorder %s14, 0
    %p88 = por %p86, %p87
    %p89 = scmp.le.s32.totalorder 1, %s8
    %p90 = scmp.lt.s32.totalorder %s8, 3
    %p91 = pnand %p89, %p90
    %p92 = pneg %p91
    // Predicated region
    $region9: #{tpu_custom_call.1} parent=5 // pred_check
      _
    $region10: #{tpu_custom_call.1} parent=5 // pred_check_branch
      %94 = sbr.rel (%p91) target = $region12
    $region11: #{tpu_custom_call.1} parent=5 // pred_region
      %s95 = ssub.s32 %s8, 1
      // Predicated region
      $region13: #{tpu_custom_call.1} parent=11 // pred_check
        %p96 = pneg %p55
      $region14: #{tpu_custom_call.1} parent=11 // pred_check_branch
        %98 = sbr.rel (%p96) target = $region16
      $region15: #{tpu_custom_call.1} parent=11 // pred_region
        _
      $region16: #{tpu_custom_call.1} parent=11 // pred_fallthru
        _
    $region12: #{tpu_custom_call.1} parent=5 // pred_fallthru
      _
    %p99 = scmp.lt.s32.totalorder %s8, 2
    // Predicated region
    $region17: #{tpu_custom_call.1} parent=5 // pred_check
      %p100 = pneg %p99
    $region18: #{tpu_custom_call.1} parent=5 // pred_check_branch
      %102 = sbr.rel (%p100) target = $region20
    $region19: #{tpu_custom_call.1} parent=5 // pred_region
      // Predicated region
      $region21: #{tpu_custom_call.1} parent=19 // pred_check
        %p103 = pneg %p28
      $region22: #{tpu_custom_call.1} parent=19 // pred_check_branch
        %105 = sbr.rel (%p103) target = $region24
      $region23: #{tpu_custom_call.1} parent=19 // pred_region
        %s106 = smul.u32 64, %s8
        %p107 = scmp.lt.s32.totalorder %s106, 127
        %s108 = scalar_select %p107, %s106, 127
        %s109 = smul.addr %s108, 8
        %s110 = scalar_lea.vmem %s0, %s109
        %s111 = smul.u32 64, %s8
      $region24: #{tpu_custom_call.1} parent=19 // pred_fallthru
        _
    $region20: #{tpu_custom_call.1} parent=5 // pred_fallthru
      _
    %p112 = scmp.le.s32.totalorder 1, %s8
    %p113 = scmp.lt.s32.totalorder %s8, 3
    %p114 = pnand %p112, %p113
    %p115 = pneg %p114
    // Predicated region
    $region25: #{tpu_custom_call.1} parent=5 // pred_check
      _
    $region26: #{tpu_custom_call.1} parent=5 // pred_check_branch
      %117 = sbr.rel (%p114) target = $region28
    $region27: #{tpu_custom_call.1} parent=5 // pred_region
      %s118 = ssub.s32 %s8, 1
      %s119 = smul.u32 64, %s13
      %p120 = scmp.lt.s32.totalorder %s119, 127
      %s121 = scalar_select %p120, %s119, 127
      %s122 = smul.addr %s121, 8
      %s123 = scalar_lea.vmem %s0, %s122
      %p124 = pneg %p34
      %p125 = pneg %p31
      %p126 = pneg %p55
      %p127 = pneg %p52
      %p128 = pneg %p81
      %p129 = pneg %p78
      %s130 = smul.u32 64, %s13
      %p131 = scmp.lt.s32.totalorder %s130, 127
      %s132 = scalar_select %p131, %s130, 127
      %s133 = smul.addr %s132, 8
      %s134 = scalar_lea.vmem %s2, %s133
      %s135 = smul.u32 64, %s13
      %p136 = scmp.lt.s32.totalorder %s135, 127
      %s137 = scalar_select %p136, %s135, 127
      %s138 = smul.addr %s137, 8
      %s139 = scalar_lea.vmem %s0, %s138
      %s140 = smul.u32 64, %s13
      %s141 = smul.u32 64, %s13
      %p142 = scmp.lt.s32.totalorder %s141, 127
      %s143 = scalar_select %p142, %s141, 127
      %s144 = smul.addr %s143, 8
      %s145 = scalar_lea.vmem %s2, %s144
      %s146 = smul.u32 64, %s13
      %v147 = vld [vmem:[%s139] sm:$0xff]
      %v148 = vld [vmem:[%s139 + $0x8] sm:$0xff]
      %v149 = vld [vmem:[%s139 + $0x10] sm:$0xff]
      %v150 = vld [vmem:[%s139 + $0x18] sm:$0xff]
      %v151 = vld [vmem:[%s139 + $0x20] sm:$0xff]
      %v152 = vld [vmem:[%s139 + $0x28] sm:$0xff]
      %v153 = vld [vmem:[%s139 + $0x30] sm:$0xff]
      %v154 = vld [vmem:[%s139 + $0x38] sm:$0xff]
      %v155 = vld [vmem:[%s139 + $0x40] sm:$0xff]
      %v156 = vld [vmem:[%s139 + $0x48] sm:$0xff]
      %v157 = vld [vmem:[%s139 + $0x50] sm:$0xff]
      %v158 = vld [vmem:[%s139 + $0x58] sm:$0xff]
      %v159 = vld [vmem:[%s139 + $0x60] sm:$0xff]
      %v160 = vld [vmem:[%s139 + $0x68] sm:$0xff]
      %v161 = vld [vmem:[%s139 + $0x70] sm:$0xff]
      %v162 = vld [vmem:[%s139 + $0x78] sm:$0xff]
      %v163 = vld [vmem:[%s139 + $0x80] sm:$0xff]
      %v164 = vld [vmem:[%s139 + $0x88] sm:$0xff]
      %v165 = vld [vmem:[%s139 + $0x90] sm:$0xff]
      %v166 = vld [vmem:[%s139 + $0x98] sm:$0xff]
      %v167 = vld [vmem:[%s139 + $0xa0] sm:$0xff]
      %v168 = vld [vmem:[%s139 + $0xa8] sm:$0xff]
      %v169 = vld [vmem:[%s139 + $0xb0] sm:$0xff]
      %v170 = vld [vmem:[%s139 + $0xb8] sm:$0xff]
      %v171 = vld [vmem:[%s139 + $0xc0] sm:$0xff]
      %v172 = vld [vmem:[%s139 + $0xc8] sm:$0xff]
      %v173 = vld [vmem:[%s139 + $0xd0] sm:$0xff]
      %v174 = vld [vmem:[%s139 + $0xd8] sm:$0xff]
      %v175 = vld [vmem:[%s139 + $0xe0] sm:$0xff]
      %v176 = vld [vmem:[%s139 + $0xe8] sm:$0xff]
      %v177 = vld [vmem:[%s139 + $0xf0] sm:$0xff]
      %v178 = vld [vmem:[%s139 + $0xf8] sm:$0xff]
      %v179 = vld [vmem:[%s139 + $0x100] sm:$0xff]
      %v180 = vld [vmem:[%s139 + $0x108] sm:$0xff]
      %v181 = vld [vmem:[%s139 + $0x110] sm:$0xff]
      %v182 = vld [vmem:[%s139 + $0x118] sm:$0xff]
      %v183 = vld [vmem:[%s139 + $0x120] sm:$0xff]
      %v184 = vld [vmem:[%s139 + $0x128] sm:$0xff]
      %v185 = vld [vmem:[%s139 + $0x130] sm:$0xff]
      %v186 = vld [vmem:[%s139 + $0x138] sm:$0xff]
      %v187 = vld [vmem:[%s139 + $0x140] sm:$0xff]
      %v188 = vld [vmem:[%s139 + $0x148] sm:$0xff]
      %v189 = vld [vmem:[%s139 + $0x150] sm:$0xff]
      %v190 = vld [vmem:[%s139 + $0x158] sm:$0xff]
      %v191 = vld [vmem:[%s139 + $0x160] sm:$0xff]
      %v192 = vld [vmem:[%s139 + $0x168] sm:$0xff]
      %v193 = vld [vmem:[%s139 + $0x170] sm:$0xff]
      %v194 = vld [vmem:[%s139 + $0x178] sm:$0xff]
      %v195 = vld [vmem:[%s139 + $0x180] sm:$0xff]
      %v196 = vld [vmem:[%s139 + $0x188] sm:$0xff]
      %v197 = vld [vmem:[%s139 + $0x190] sm:$0xff]
      %v198 = vld [vmem:[%s139 + $0x198] sm:$0xff]
      %v199 = vld [vmem:[%s139 + $0x1a0] sm:$0xff]
      %v200 = vld [vmem:[%s139 + $0x1a8] sm:$0xff]
      %v201 = vld [vmem:[%s139 + $0x1b0] sm:$0xff]
      %v202 = vld [vmem:[%s139 + $0x1b8] sm:$0xff]
      %v203 = vld [vmem:[%s139 + $0x1c0] sm:$0xff]
      %v204 = vld [vmem:[%s139 + $0x1c8] sm:$0xff]
      %v205 = vld [vmem:[%s139 + $0x1d0] sm:$0xff]
      %v206 = vld [vmem:[%s139 + $0x1d8] sm:$0xff]
      %v207 = vld [vmem:[%s139 + $0x1e0] sm:$0xff]
      %v208 = vld [vmem:[%s139 + $0x1e8] sm:$0xff]
      %v209 = vld [vmem:[%s139 + $0x1f0] sm:$0xff]
      %v210 = vld [vmem:[%s139 + $0x1f8] sm:$0xff]
      %v211 = vlaneseq
      %v212 = vand.u32 %v211, 127
      %213 = vset.pattern.permute.xlu0 0
      %214 = vperm.xlu0 %213, %v147
      %v215 = vpop.permute.xlu0 %214
      %216 = vset.pattern.permute.xlu0 0
      %217 = vperm.xlu0 %216, %v148
      %v218 = vpop.permute.xlu0 %217
      %219 = vset.pattern.permute.xlu0 0
      %220 = vperm.xlu0 %219, %v149
      %v221 = vpop.permute.xlu0 %220
      %222 = vset.pattern.permute.xlu0 0
      %223 = vperm.xlu0 %222, %v150
      %v224 = vpop.permute.xlu0 %223
      %225 = vset.pattern.permute.xlu0 0
      %226 = vperm.xlu0 %225, %v151
      %v227 = vpop.permute.xlu0 %226
      %228 = vset.pattern.permute.xlu0 0
      %229 = vperm.xlu0 %228, %v152
      %v230 = vpop.permute.xlu0 %229
      %231 = vset.pattern.permute.xlu0 0
      %232 = vperm.xlu0 %231, %v153
      %v233 = vpop.permute.xlu0 %232
      %234 = vset.pattern.permute.xlu0 0
      %235 = vperm.xlu0 %234, %v154
      %v236 = vpop.permute.xlu0 %235
      %237 = vset.pattern.permute.xlu0 0
      %238 = vperm.xlu0 %237, %v155
      %v239 = vpop.permute.xlu0 %238
      %240 = vset.pattern.permute.xlu0 0
      %241 = vperm.xlu0 %240, %v156
      %v242 = vpop.permute.xlu0 %241
      %243 = vset.pattern.permute.xlu0 0
      %244 = vperm.xlu0 %243, %v157
      %v245 = vpop.permute.xlu0 %244
      %246 = vset.pattern.permute.xlu0 0
      %247 = vperm.xlu0 %246, %v158
      %v248 = vpop.permute.xlu0 %247
      %249 = vset.pattern.permute.xlu0 0
      %250 = vperm.xlu0 %249, %v159
      %v251 = vpop.permute.xlu0 %250
      %252 = vset.pattern.permute.xlu0 0
      %253 = vperm.xlu0 %252, %v160
      %v254 = vpop.permute.xlu0 %253
      %255 = vset.pattern.permute.xlu0 0
      %256 = vperm.xlu0 %255, %v161
      %v257 = vpop.permute.xlu0 %256
      %258 = vset.pattern.permute.xlu0 0
      %259 = vperm.xlu0 %258, %v162
      %v260 = vpop.permute.xlu0 %259
      %261 = vset.pattern.permute.xlu0 0
      %262 = vperm.xlu0 %261, %v163
      %v263 = vpop.permute.xlu0 %262
      %264 = vset.pattern.permute.xlu0 0
      %265 = vperm.xlu0 %264, %v164
      %v266 = vpop.permute.xlu0 %265
      %267 = vset.pattern.permute.xlu0 0
      %268 = vperm.xlu0 %267, %v165
      %v269 = vpop.permute.xlu0 %268
      %270 = vset.pattern.permute.xlu0 0
      %271 = vperm.xlu0 %270, %v166
      %v272 = vpop.permute.xlu0 %271
      %273 = vset.pattern.permute.xlu0 0
      %274 = vperm.xlu0 %273, %v167
      %v275 = vpop.permute.xlu0 %274
      %276 = vset.pattern.permute.xlu0 0
      %277 = vperm.xlu0 %276, %v168
      %v278 = vpop.permute.xlu0 %277
      %279 = vset.pattern.permute.xlu0 0
      %280 = vperm.xlu0 %279, %v169
      %v281 = vpop.permute.xlu0 %280
      %282 = vset.pattern.permute.xlu0 0
      %283 = vperm.xlu0 %282, %v170
      %v284 = vpop.permute.xlu0 %283
      %285 = vset.pattern.permute.xlu0 0
      %286 = vperm.xlu0 %285, %v171
      %v287 = vpop.permute.xlu0 %286
      %288 = vset.pattern.permute.xlu0 0
      %289 = vperm.xlu0 %288, %v172
      %v290 = vpop.permute.xlu0 %289
      %291 = vset.pattern.permute.xlu0 0
      %292 = vperm.xlu0 %291, %v173
      %v293 = vpop.permute.xlu0 %292
      %294 = vset.pattern.permute.xlu0 0
      %295 = vperm.xlu0 %294, %v174
      %v296 = vpop.permute.xlu0 %295
      %297 = vset.pattern.permute.xlu0 0
      %298 = vperm.xlu0 %297, %v175
      %v299 = vpop.permute.xlu0 %298
      %300 = vset.pattern.permute.xlu0 0
      %301 = vperm.xlu0 %300, %v176
      %v302 = vpop.permute.xlu0 %301
      %303 = vset.pattern.permute.xlu0 0
      %304 = vperm.xlu0 %303, %v177
      %v305 = vpop.permute.xlu0 %304
      %306 = vset.pattern.permute.xlu0 0
      %307 = vperm.xlu0 %306, %v178
      %v308 = vpop.permute.xlu0 %307
      %309 = vset.pattern.permute.xlu0 0
      %310 = vperm.xlu0 %309, %v179
      %v311 = vpop.permute.xlu0 %310
      %312 = vset.pattern.permute.xlu0 0
      %313 = vperm.xlu0 %312, %v180
      %v314 = vpop.permute.xlu0 %313
      %315 = vset.pattern.permute.xlu0 0
      %316 = vperm.xlu0 %315, %v181
      %v317 = vpop.permute.xlu0 %316
      %318 = vset.pattern.permute.xlu0 0
      %319 = vperm.xlu0 %318, %v182
      %v320 = vpop.permute.xlu0 %319
      %321 = vset.pattern.permute.xlu0 0
      %322 = vperm.xlu0 %321, %v183
      %v323 = vpop.permute.xlu0 %322
      %324 = vset.pattern.permute.xlu0 0
      %325 = vperm.xlu0 %324, %v184
      %v326 = vpop.permute.xlu0 %325
      %327 = vset.pattern.permute.xlu0 0
      %328 = vperm.xlu0 %327, %v185
      %v329 = vpop.permute.xlu0 %328
      %330 = vset.pattern.permute.xlu0 0
      %331 = vperm.xlu0 %330, %v186
      %v332 = vpop.permute.xlu0 %331
      %333 = vset.pattern.permute.xlu0 0
      %334 = vperm.xlu0 %333, %v187
      %v335 = vpop.permute.xlu0 %334
      %336 = vset.pattern.permute.xlu0 0
      %337 = vperm.xlu0 %336, %v188
      %v338 = vpop.permute.xlu0 %337
      %339 = vset.pattern.permute.xlu0 0
      %340 = vperm.xlu0 %339, %v189
      %v341 = vpop.permute.xlu0 %340
      %342 = vset.pattern.permute.xlu0 0
      %343 = vperm.xlu0 %342, %v190
      %v344 = vpop.permute.xlu0 %343
      %345 = vset.pattern.permute.xlu0 0
      %346 = vperm.xlu0 %345, %v191
      %v347 = vpop.permute.xlu0 %346
      %348 = vset.pattern.permute.xlu0 0
      %349 = vperm.xlu0 %348, %v192
      %v350 = vpop.permute.xlu0 %349
      %351 = vset.pattern.permute.xlu0 0
      %352 = vperm.xlu0 %351, %v193
      %v353 = vpop.permute.xlu0 %352
      %354 = vset.pattern.permute.xlu0 0
      %355 = vperm.xlu0 %354, %v194
      %v356 = vpop.permute.xlu0 %355
      %357 = vset.pattern.permute.xlu0 0
      %358 = vperm.xlu0 %357, %v195
      %v359 = vpop.permute.xlu0 %358
      %360 = vset.pattern.permute.xlu0 0
      %361 = vperm.xlu0 %360, %v196
      %v362 = vpop.permute.xlu0 %361
      %363 = vset.pattern.permute.xlu0 0
      %364 = vperm.xlu0 %363, %v197
      %v365 = vpop.permute.xlu0 %364
      %366 = vset.pattern.permute.xlu0 0
      %367 = vperm.xlu0 %366, %v198
      %v368 = vpop.permute.xlu0 %367
      %369 = vset.pattern.permute.xlu0 0
      %370 = vperm.xlu0 %369, %v199
      %v371 = vpop.permute.xlu0 %370
      %372 = vset.pattern.permute.xlu0 0
      %373 = vperm.xlu0 %372, %v200
      %v374 = vpop.permute.xlu0 %373
      %375 = vset.pattern.permute.xlu0 0
      %376 = vperm.xlu0 %375, %v201
      %v377 = vpop.permute.xlu0 %376
      %378 = vset.pattern.permute.xlu0 0
      %379 = vperm.xlu0 %378, %v202
      %v380 = vpop.permute.xlu0 %379
      %381 = vset.pattern.permute.xlu0 0
      %382 = vperm.xlu0 %381, %v203
      %v383 = vpop.permute.xlu0 %382
      %384 = vset.pattern.permute.xlu0 0
      %385 = vperm.xlu0 %384, %v204
      %v386 = vpop.permute.xlu0 %385
      %387 = vset.pattern.permute.xlu0 0
      %388 = vperm.xlu0 %387, %v205
      %v389 = vpop.permute.xlu0 %388
      %390 = vset.pattern.permute.xlu0 0
      %391 = vperm.xlu0 %390, %v206
      %v392 = vpop.permute.xlu0 %391
      %393 = vset.pattern.permute.xlu0 0
      %394 = vperm.xlu0 %393, %v207
      %v395 = vpop.permute.xlu0 %394
      %396 = vset.pattern.permute.xlu0 0
      %397 = vperm.xlu0 %396, %v208
      %v398 = vpop.permute.xlu0 %397
      %399 = vset.pattern.permute.xlu0 0
      %400 = vperm.xlu0 %399, %v209
      %v401 = vpop.permute.xlu0 %400
      %402 = vset.pattern.permute.xlu0 0
      %403 = vperm.xlu0 %402, %v210
      %v404 = vpop.permute.xlu0 %403
      %vm405 = vcmp.eq.s32.totalorder %v212, %v215
      %vm406 = vcmp.eq.s32.totalorder %v212, %v218
      %vm407 = vcmp.eq.s32.totalorder %v212, %v221
      %vm408 = vcmp.eq.s32.totalorder %v212, %v224
      %vm409 = vcmp.eq.s32.totalorder %v212, %v227
      %vm410 = vcmp.eq.s32.totalorder %v212, %v230
      %vm411 = vcmp.eq.s32.totalorder %v212, %v233
      %vm412 = vcmp.eq.s32.totalorder %v212, %v236
      %vm413 = vcmp.eq.s32.totalorder %v212, %v239
      %vm414 = vcmp.eq.s32.totalorder %v212, %v242
      %vm415 = vcmp.eq.s32.totalorder %v212, %v245
      %vm416 = vcmp.eq.s32.totalorder %v212, %v248
      %vm417 = vcmp.eq.s32.totalorder %v212, %v251
      %vm418 = vcmp.eq.s32.totalorder %v212, %v254
      %vm419 = vcmp.eq.s32.totalorder %v212, %v257
      %vm420 = vcmp.eq.s32.totalorder %v212, %v260
      %vm421 = vcmp.eq.s32.totalorder %v212, %v263
      %vm422 = vcmp.eq.s32.totalorder %v212, %v266
      %vm423 = vcmp.eq.s32.totalorder %v212, %v269
      %vm424 = vcmp.eq.s32.totalorder %v212, %v272
      %vm425 = vcmp.eq.s32.totalorder %v212, %v275
      %vm426 = vcmp.eq.s32.totalorder %v212, %v278
      %vm427 = vcmp.eq.s32.totalorder %v212, %v281
      %vm428 = vcmp.eq.s32.totalorder %v212, %v284
      %vm429 = vcmp.eq.s32.totalorder %v212, %v287
      %vm430 = vcmp.eq.s32.totalorder %v212, %v290
      %vm431 = vcmp.eq.s32.totalorder %v212, %v293
      %vm432 = vcmp.eq.s32.totalorder %v212, %v296
      %vm433 = vcmp.eq.s32.totalorder %v212, %v299
      %vm434 = vcmp.eq.s32.totalorder %v212, %v302
      %vm435 = vcmp.eq.s32.totalorder %v212, %v305
      %vm436 = vcmp.eq.s32.totalorder %v212, %v308
      %vm437 = vcmp.eq.s32.totalorder %v212, %v311
      %vm438 = vcmp.eq.s32.totalorder %v212, %v314
      %vm439 = vcmp.eq.s32.totalorder %v212, %v317
      %vm440 = vcmp.eq.s32.totalorder %v212, %v320
      %vm441 = vcmp.eq.s32.totalorder %v212, %v323
      %vm442 = vcmp.eq.s32.totalorder %v212, %v326
      %vm443 = vcmp.eq.s32.totalorder %v212, %v329
      %vm444 = vcmp.eq.s32.totalorder %v212, %v332
      %vm445 = vcmp.eq.s32.totalorder %v212, %v335
      %vm446 = vcmp.eq.s32.totalorder %v212, %v338
      %vm447 = vcmp.eq.s32.totalorder %v212, %v341
      %vm448 = vcmp.eq.s32.totalorder %v212, %v344
      %vm449 = vcmp.eq.s32.totalorder %v212, %v347
      %vm450 = vcmp.eq.s32.totalorder %v212, %v350
      %vm451 = vcmp.eq.s32.totalorder %v212, %v353
      %vm452 = vcmp.eq.s32.totalorder %v212, %v356
      %vm453 = vcmp.eq.s32.totalorder %v212, %v359
      %vm454 = vcmp.eq.s32.totalorder %v212, %v362
      %vm455 = vcmp.eq.s32.totalorder %v212, %v365
      %vm456 = vcmp.eq.s32.totalorder %v212, %v368
      %vm457 = vcmp.eq.s32.totalorder %v212, %v371
      %vm458 = vcmp.eq.s32.totalorder %v212, %v374
      %vm459 = vcmp.eq.s32.totalorder %v212, %v377
      %vm460 = vcmp.eq.s32.totalorder %v212, %v380
      %vm461 = vcmp.eq.s32.totalorder %v212, %v383
      %vm462 = vcmp.eq.s32.totalorder %v212, %v386
      %vm463 = vcmp.eq.s32.totalorder %v212, %v389
      %vm464 = vcmp.eq.s32.totalorder %v212, %v392
      %vm465 = vcmp.eq.s32.totalorder %v212, %v395
      %vm466 = vcmp.eq.s32.totalorder %v212, %v398
      %vm467 = vcmp.eq.s32.totalorder %v212, %v401
      %vm468 = vcmp.eq.s32.totalorder %v212, %v404
      %v469 = vsel %vm405, 1, 0
      %v470 = vsel %vm406, 1, 0
      %v471 = vsel %vm407, 1, 0
      %v472 = vsel %vm408, 1, 0
      %v473 = vsel %vm409, 1, 0
      %v474 = vsel %vm410, 1, 0
      %v475 = vsel %vm411, 1, 0
      %v476 = vsel %vm412, 1, 0
      %v477 = vsel %vm413, 1, 0
      %v478 = vsel %vm414, 1, 0
      %v479 = vsel %vm415, 1, 0
      %v480 = vsel %vm416, 1, 0
      %v481 = vsel %vm417, 1, 0
      %v482 = vsel %vm418, 1, 0
      %v483 = vsel %vm419, 1, 0
      %v484 = vsel %vm420, 1, 0
      %v485 = vsel %vm421, 1, 0
      %v486 = vsel %vm422, 1, 0
      %v487 = vsel %vm423, 1, 0
      %v488 = vsel %vm424, 1, 0
      %v489 = vsel %vm425, 1, 0
      %v490 = vsel %vm426, 1, 0
      %v491 = vsel %vm427, 1, 0
      %v492 = vsel %vm428, 1, 0
      %v493 = vsel %vm429, 1, 0
      %v494 = vsel %vm430, 1, 0
      %v495 = vsel %vm431, 1, 0
      %v496 = vsel %vm432, 1, 0
      %v497 = vsel %vm433, 1, 0
      %v498 = vsel %vm434, 1, 0
      %v499 = vsel %vm435, 1, 0
      %v500 = vsel %vm436, 1, 0
      %v501 = vsel %vm437, 1, 0
      %v502 = vsel %vm438, 1, 0
      %v503 = vsel %vm439, 1, 0
      %v504 = vsel %vm440, 1, 0
      %v505 = vsel %vm441, 1, 0
      %v506 = vsel %vm442, 1, 0
      %v507 = vsel %vm443, 1, 0
      %v508 = vsel %vm444, 1, 0
      %v509 = vsel %vm445, 1, 0
      %v510 = vsel %vm446, 1, 0
      %v511 = vsel %vm447, 1, 0
      %v512 = vsel %vm448, 1, 0
      %v513 = vsel %vm449, 1, 0
      %v514 = vsel %vm450, 1, 0
      %v515 = vsel %vm451, 1, 0
      %v516 = vsel %vm452, 1, 0
      %v517 = vsel %vm453, 1, 0
      %v518 = vsel %vm454, 1, 0
      %v519 = vsel %vm455, 1, 0
      %v520 = vsel %vm456, 1, 0
      %v521 = vsel %vm457, 1, 0
      %v522 = vsel %vm458, 1, 0
      %v523 = vsel %vm459, 1, 0
      %v524 = vsel %vm460, 1, 0
      %v525 = vsel %vm461, 1, 0
      %v526 = vsel %vm462, 1, 0
      %v527 = vsel %vm463, 1, 0
      %v528 = vsel %vm464, 1, 0
      %v529 = vsel %vm465, 1, 0
      %v530 = vsel %vm466, 1, 0
      %v531 = vsel %vm467, 1, 0
      %v532 = vsel %vm468, 1, 0
      %v533 = vcvt.s32.f32 %v469
      %v534 = vcvt.s32.f32 %v470
      %v535 = vcvt.s32.f32 %v471
      %v536 = vcvt.s32.f32 %v472
      %v537 = vcvt.s32.f32 %v473
      %v538 = vcvt.s32.f32 %v474
      %v539 = vcvt.s32.f32 %v475
      %v540 = vcvt.s32.f32 %v476
      %v541 = vcvt.s32.f32 %v477
      %v542 = vcvt.s32.f32 %v478
      %v543 = vcvt.s32.f32 %v479
      %v544 = vcvt.s32.f32 %v480
      %v545 = vcvt.s32.f32 %v481
      %v546 = vcvt.s32.f32 %v482
      %v547 = vcvt.s32.f32 %v483
      %v548 = vcvt.s32.f32 %v484
      %v549 = vcvt.s32.f32 %v485
      %v550 = vcvt.s32.f32 %v486
      %v551 = vcvt.s32.f32 %v487
      %v552 = vcvt.s32.f32 %v488
      %v553 = vcvt.s32.f32 %v489
      %v554 = vcvt.s32.f32 %v490
      %v555 = vcvt.s32.f32 %v491
      %v556 = vcvt.s32.f32 %v492
      %v557 = vcvt.s32.f32 %v493
      %v558 = vcvt.s32.f32 %v494
      %v559 = vcvt.s32.f32 %v495
      %v560 = vcvt.s32.f32 %v496
      %v561 = vcvt.s32.f32 %v497
      %v562 = vcvt.s32.f32 %v498
      %v563 = vcvt.s32.f32 %v499
      %v564 = vcvt.s32.f32 %v500
      %v565 = vcvt.s32.f32 %v501
      %v566 = vcvt.s32.f32 %v502
      %v567 = vcvt.s32.f32 %v503
      %v568 = vcvt.s32.f32 %v504
      %v569 = vcvt.s32.f32 %v505
      %v570 = vcvt.s32.f32 %v506
      %v571 = vcvt.s32.f32 %v507
      %v572 = vcvt.s32.f32 %v508
      %v573 = vcvt.s32.f32 %v509
      %v574 = vcvt.s32.f32 %v510
      %v575 = vcvt.s32.f32 %v511
      %v576 = vcvt.s32.f32 %v512
      %v577 = vcvt.s32.f32 %v513
      %v578 = vcvt.s32.f32 %v514
      %v579 = vcvt.s32.f32 %v515
      %v580 = vcvt.s32.f32 %v516
      %v581 = vcvt.s32.f32 %v517
      %v582 = vcvt.s32.f32 %v518
      %v583 = vcvt.s32.f32 %v519
      %v584 = vcvt.s32.f32 %v520
      %v585 = vcvt.s32.f32 %v521
      %v586 = vcvt.s32.f32 %v522
      %v587 = vcvt.s32.f32 %v523
      %v588 = vcvt.s32.f32 %v524
      %v589 = vcvt.s32.f32 %v525
      %v590 = vcvt.s32.f32 %v526
      %v591 = vcvt.s32.f32 %v527
      %v592 = vcvt.s32.f32 %v528
      %v593 = vcvt.s32.f32 %v529
      %v594 = vcvt.s32.f32 %v530
      %v595 = vcvt.s32.f32 %v531
      %v596 = vcvt.s32.f32 %v532
      %v597 = vld [vmem:[%s1] sm:$0xff]
      %v598 = vld [vmem:[%s1 + $0x8] sm:$0xff]
      %v599 = vld [vmem:[%s1 + $0x10] sm:$0xff]
      %v600 = vld [vmem:[%s1 + $0x18] sm:$0xff]
      %vm601 = vcmask 261120
      %v603 = vsel %vm601, %v533, 0
      %v606 = vsel %vm601, %v534, 0
      %v609 = vsel %vm601, %v535, 0
      %v612 = vsel %vm601, %v536, 0
      %v615 = vsel %vm601, %v537, 0
      %v618 = vsel %vm601, %v538, 0
      %v621 = vsel %vm601, %v539, 0
      %v624 = vsel %vm601, %v540, 0
      %v627 = vsel %vm601, %v541, 0
      %v630 = vsel %vm601, %v542, 0
      %v633 = vsel %vm601, %v543, 0
      %v636 = vsel %vm601, %v544, 0
      %v639 = vsel %vm601, %v545, 0
      %v642 = vsel %vm601, %v546, 0
      %v645 = vsel %vm601, %v547, 0
      %v648 = vsel %vm601, %v548, 0
      %v651 = vsel %vm601, %v549, 0
      %v654 = vsel %vm601, %v550, 0
      %v657 = vsel %vm601, %v551, 0
      %v660 = vsel %vm601, %v552, 0
      %v663 = vsel %vm601, %v553, 0
      %v666 = vsel %vm601, %v554, 0
      %v669 = vsel %vm601, %v555, 0
      %v672 = vsel %vm601, %v556, 0
      %v675 = vsel %vm601, %v557, 0
      %v678 = vsel %vm601, %v558, 0
      %v681 = vsel %vm601, %v559, 0
      %v684 = vsel %vm601, %v560, 0
      %v687 = vsel %vm601, %v561, 0
      %v690 = vsel %vm601, %v562, 0
      %v693 = vsel %vm601, %v563, 0
      %v696 = vsel %vm601, %v564, 0
      %v699 = vsel %vm601, %v565, 0
      %v702 = vsel %vm601, %v566, 0
      %v705 = vsel %vm601, %v567, 0
      %v708 = vsel %vm601, %v568, 0
      %v711 = vsel %vm601, %v569, 0
      %v714 = vsel %vm601, %v570, 0
      %v717 = vsel %vm601, %v571, 0
      %v720 = vsel %vm601, %v572, 0
      %v723 = vsel %vm601, %v573, 0
      %v726 = vsel %vm601, %v574, 0
      %v729 = vsel %vm601, %v575, 0
      %v732 = vsel %vm601, %v576, 0
      %v735 = vsel %vm601, %v577, 0
      %v738 = vsel %vm601, %v578, 0
      %v741 = vsel %vm601, %v579, 0
      %v744 = vsel %vm601, %v580, 0
      %v747 = vsel %vm601, %v581, 0
      %v750 = vsel %vm601, %v582, 0
      %v753 = vsel %vm601, %v583, 0
      %v756 = vsel %vm601, %v584, 0
      %v759 = vsel %vm601, %v585, 0
      %v762 = vsel %vm601, %v586, 0
      %v765 = vsel %vm601, %v587, 0
      %v768 = vsel %vm601, %v588, 0
      %v771 = vsel %vm601, %v589, 0
      %v774 = vsel %vm601, %v590, 0
      %v777 = vsel %vm601, %v591, 0
      %v780 = vsel %vm601, %v592, 0
      %v783 = vsel %vm601, %v593, 0
      %v786 = vsel %vm601, %v594, 0
      %v789 = vsel %vm601, %v595, 0
      %v792 = vsel %vm601, %v596, 0
      %794 = vmatprep.subr.mxu0 0.0
      %795 = vmatpush1.msra.mxu0 %v597
      %796 = vmatprep.subr.mxu0 0.0
      %797 = vmatpush1.msra.mxu0 %v598
      %798 = vmatprep.subr.mxu0 0.0
      %799 = vmatpush1.msra.mxu0 %v599
      %800 = vmatprep.subr.mxu0 0.0
      %801 = vmatpush1.msra.mxu0 %v600
      %802 = vmatprep.subr.mxu0 0.0
      %803 = vmatpush1.msra.mxu0 0.0
      %804 = vmatprep.subr.mxu0 0.0
      %805 = vmatpush1.msra.mxu0 0.0
      %806 = vmatprep.subr.mxu0 0.0
      %807 = vmatpush1.msra.mxu0 0.0
      %808 = vmatprep.subr.mxu0 0.0
      %809 = vmatpush1.msra.mxu0 0.0
      %810 = vmatprep.subr.mxu0 0.0
      %811 = vmatpush1.msra.mxu0 0.0
      %812 = vmatprep.subr.mxu0 0.0
      %813 = vmatpush1.msra.mxu0 0.0
      %814 = vmatprep.subr.mxu0 0.0
      %815 = vmatpush1.msra.mxu0 0.0
      %816 = vmatprep.subr.mxu0 0.0
      %817 = vmatpush1.msra.mxu0 0.0
      %818 = vmatprep.subr.mxu0 0.0
      %819 = vmatpush1.msra.mxu0 0.0
      %820 = vmatprep.subr.mxu0 0.0
      %821 = vmatpush1.msra.mxu0 0.0
      %822 = vmatprep.subr.mxu0 0.0
      %823 = vmatpush1.msra.mxu0 0.0
      %824 = vmatprep.subr.mxu0 0.0
      %825 = vmatpush1.msra.mxu0 0.0
      %826 = vmatprep.subr.mxu0 0.0
      %827 = vmatpush1.msra.mxu0 0.0
      %828 = vmatprep.subr.mxu0 0.0
      %829 = vmatpush1.msra.mxu0 0.0
      %830 = vmatprep.subr.mxu0 0.0
      %831 = vmatpush1.msra.mxu0 0.0
      %832 = vmatprep.subr.mxu0 0.0
      %833 = vmatpush1.msra.mxu0 0.0
      %834 = vmatprep.subr.mxu0 0.0
      %835 = vmatpush1.msra.mxu0 0.0
      %836 = vmatprep.subr.mxu0 0.0
      %837 = vmatpush1.msra.mxu0 0.0
      %838 = vmatprep.subr.mxu0 0.0
      %839 = vmatpush1.msra.mxu0 0.0
      %840 = vmatprep.subr.mxu0 0.0
      %841 = vmatpush1.msra.mxu0 0.0
      %842 = vmatprep.subr.mxu0 0.0
      %843 = vmatpush1.msra.mxu0 0.0
      %844 = vmatprep.subr.mxu0 0.0
      %845 = vmatpush1.msra.mxu0 0.0
      %846 = vmatprep.subr.mxu0 0.0
      %847 = vmatpush1.msra.mxu0 0.0
      %848 = vmatprep.subr.mxu0 0.0
      %849 = vmatpush1.msra.mxu0 0.0
      %850 = vmatprep.subr.mxu0 0.0
      %851 = vmatpush1.msra.mxu0 0.0
      %852 = vmatprep.subr.mxu0 0.0
      %853 = vmatpush1.msra.mxu0 0.0
      %854 = vmatprep.subr.mxu0 0.0
      %855 = vmatpush1.msra.mxu0 0.0
      %856 = vmatprep.subr.mxu0 0.0
      %857 = vmatpush1.msra.mxu0 0.0
      %858 = vmatprep.mubr.f32.mxu0 0.0
      %859 = vmatmul.mubr.f32.gmra.mrb[0].mxu0 %v603
      %v860 = vpop.f32.mrb[0].mxu0
      %v861 = vadd.f32 0.0, %v860
      %v862 = vpop.f32.mrb[0].mxu0
      %863 = vmatprep.mubr.f32.mxu0 0.0
      %864 = vmatmul.mubr.f32.gmra.mrb[0].mxu0 %v606
      %v865 = vpop.f32.mrb[0].mxu0
      %v866 = vadd.f32 0.0, %v865
      %v867 = vpop.f32.mrb[0].mxu0
      %868 = vmatprep.mubr.f32.mxu0 0.0
      %869 = vmatmul.mubr.f32.gmra.mrb[0].mxu0 %v609
      %v870 = vpop.f32.mrb[0].mxu0
      %v871 = vadd.f32 0.0, %v870
      %v872 = vpop.f32.mrb[0].mxu0
      %873 = vmatprep.mubr.f32.mxu0 0.0
      %874 = vmatmul.mubr.f32.gmra.mrb[0].mxu0 %v612
      %v875 = vpop.f32.mrb[0].mxu0
      %v876 = vadd.f32 0.0, %v875
      %v877 = vpop.f32.mrb[0].mxu0
      %878 = vmatprep.mubr.f32.mxu0 0.0
      %879 = vmatmul.mubr.f32.gmra.mrb[0].mxu0 %v615
      %v880 = vpop.f32.mrb[0].mxu0
      %v881 = vadd.f32 0.0, %v880
      %v882 = vpop.f32.mrb[0].mxu0
      %883 = vmatprep.mubr.f32.mxu0 0.0
      %884 = vmatmul.mubr.f32.gmra.mrb[0].mxu0 %v618
      %v885 = vpop.f32.mrb[0].mxu0
      %v886 = vadd.f32 0.0, %v885
      %v887 = vpop.f32.mrb[0].mxu0
      %888 = vmatprep.mubr.f32.mxu0 0.0
      %889 = vmatmul.mubr.f32.gmra.mrb[0].mxu0 %v621
      %v890 = vpop.f32.mrb[0].mxu0
      %v891 = vadd.f32 0.0, %v890
      %v892 = vpop.f32.mrb[0].mxu0
      %893 = vmatprep.mubr.f32.mxu0 0.0
      %894 = vmatmul.mubr.f32.gmra.mrb[0].mxu0 %v624
      %v895 = vpop.f32.mrb[0].mxu0
      %v896 = vadd.f32 0.0, %v895
      %v897 = vpop.f32.mrb[0].mxu0
      %898 = vmatprep.mubr.f32.mxu0 0.0
      %899 = vmatmul.mubr.f32.gmra.mrb[0].mxu0 %v627
      %v900 = vpop.f32.mrb[0].mxu0
      %v901 = vadd.f32 0.0, %v900
      %v902 = vpop.f32.mrb[0].mxu0
      %903 = vmatprep.mubr.f32.mxu0 0.0
      %904 = vmatmul.mubr.f32.gmra.mrb[0].mxu0 %v630
      %v905 = vpop.f32.mrb[0].mxu0
      %v906 = vadd.f32 0.0, %v905
      %v907 = vpop.f32.mrb[0].mxu0
      %908 = vmatprep.mubr.f32.mxu0 0.0
      %909 = vmatmul.mubr.f32.gmra.mrb[0].mxu0 %v633
      %v910 = vpop.f32.mrb[0].mxu0
      %v911 = vadd.f32 0.0, %v910
      %v912 = vpop.f32.mrb[0].mxu0
      %913 = vmatprep.mubr.f32.mxu0 0.0
      %914 = vmatmul.mubr.f32.gmra.mrb[0].mxu0 %v636
      %v915 = vpop.f32.mrb[0].mxu0
      %v916 = vadd.f32 0.0, %v915
      %v917 = vpop.f32.mrb[0].mxu0
      %918 = vmatprep.mubr.f32.mxu0 0.0
      %919 = vmatmul.mubr.f32.gmra.mrb[0].mxu0 %v639
      %v920 = vpop.f32.mrb[0].mxu0
      %v921 = vadd.f32 0.0, %v920
      %v922 = vpop.f32.mrb[0].mxu0
      %923 = vmatprep.mubr.f32.mxu0 0.0
      %924 = vmatmul.mubr.f32.gmra.mrb[0].mxu0 %v642
      %v925 = vpop.f32.mrb[0].mxu0
      %v926 = vadd.f32 0.0, %v925
      %v927 = vpop.f32.mrb[0].mxu0
      %928 = vmatprep.mubr.f32.mxu0 0.0
      %929 = vmatmul.mubr.f32.gmra.mrb[0].mxu0 %v645
      %v930 = vpop.f32.mrb[0].mxu0
      %v931 = vadd.f32 0.0, %v930
      %v932 = vpop.f32.mrb[0].mxu0
      %933 = vmatprep.mubr.f32.mxu0 0.0
      %934 = vmatmul.mubr.f32.gmra.mrb[0].mxu0 %v648
      %v935 = vpop.f32.mrb[0].mxu0
      %v936 = vadd.f32 0.0, %v935
      %v937 = vpop.f32.mrb[0].mxu0
      %938 = vmatprep.mubr.f32.mxu0 0.0
      %939 = vmatmul.mubr.f32.gmra.mrb[0].mxu0 %v651
      %v940 = vpop.f32.mrb[0].mxu0
      %v941 = vadd.f32 0.0, %v940
      %v942 = vpop.f32.mrb[0].mxu0
      %943 = vmatprep.mubr.f32.mxu0 0.0
      %944 = vmatmul.mubr.f32.gmra.mrb[0].mxu0 %v654
      %v945 = vpop.f32.mrb[0].mxu0
      %v946 = vadd.f32 0.0, %v945
      %v947 = vpop.f32.mrb[0].mxu0
      %948 = vmatprep.mubr.f32.mxu0 0.0
      %949 = vmatmul.mubr.f32.gmra.mrb[0].mxu0 %v657
      %v950 = vpop.f32.mrb[0].mxu0
      %v951 = vadd.f32 0.0, %v950
      %v952 = vpop.f32.mrb[0].mxu0
      %953 = vmatprep.mubr.f32.mxu0 0.0
      %954 = vmatmul.mubr.f32.gmra.mrb[0].mxu0 %v660
      %v955 = vpop.f32.mrb[0].mxu0
      %v956 = vadd.f32 0.0, %v955
      %v957 = vpop.f32.mrb[0].mxu0
      %958 = vmatprep.mubr.f32.mxu0 0.0
      %959 = vmatmul.mubr.f32.gmra.mrb[0].mxu0 %v663
      %v960 = vpop.f32.mrb[0].mxu0
      %v961 = vadd.f32 0.0, %v960
      %v962 = vpop.f32.mrb[0].mxu0
      %963 = vmatprep.mubr.f32.mxu0 0.0
      %964 = vmatmul.mubr.f32.gmra.mrb[0].mxu0 %v666
      %v965 = vpop.f32.mrb[0].mxu0
      %v966 = vadd.f32 0.0, %v965
      %v967 = vpop.f32.mrb[0].mxu0
      %968 = vmatprep.mubr.f32.mxu0 0.0
      %969 = vmatmul.mubr.f32.gmra.mrb[0].mxu0 %v669
      %v970 = vpop.f32.mrb[0].mxu0
      %v971 = vadd.f32 0.0, %v970
      %v972 = vpop.f32.mrb[0].mxu0
      %973 = vmatprep.mubr.f32.mxu0 0.0
      %974 = vmatmul.mubr.f32.gmra.mrb[0].mxu0 %v672
      %v975 = vpop.f32.mrb[0].mxu0
      %v976 = vadd.f32 0.0, %v975
      %v977 = vpop.f32.mrb[0].mxu0
      %978 = vmatprep.mubr.f32.mxu0 0.0
      %979 = vmatmul.mubr.f32.gmra.mrb[0].mxu0 %v675
      %v980 = vpop.f32.mrb[0].mxu0
      %v981 = vadd.f32 0.0, %v980
      %v982 = vpop.f32.mrb[0].mxu0
      %983 = vmatprep.mubr.f32.mxu0 0.0
      %984 = vmatmul.mubr.f32.gmra.mrb[0].mxu0 %v678
      %v985 = vpop.f32.mrb[0].mxu0
      %v986 = vadd.f32 0.0, %v985
      %v987 = vpop.f32.mrb[0].mxu0
      %988 = vmatprep.mubr.f32.mxu0 0.0
      %989 = vmatmul.mubr.f32.gmra.mrb[0].mxu0 %v681
      %v990 = vpop.f32.mrb[0].mxu0
      %v991 = vadd.f32 0.0, %v990
      %v992 = vpop.f32.mrb[0].mxu0
      %993 = vmatprep.mubr.f32.mxu0 0.0
      %994 = vmatmul.mubr.f32.gmra.mrb[0].mxu0 %v684
      %v995 = vpop.f32.mrb[0].mxu0
      %v996 = vadd.f32 0.0, %v995
      %v997 = vpop.f32.mrb[0].mxu0
      %998 = vmatprep.mubr.f32.mxu0 0.0
      %999 = vmatmul.mubr.f32.gmra.mrb[0].mxu0 %v687
      %v1000 = vpop.f32.mrb[0].mxu0
      %v1001 = vadd.f32 0.0, %v1000
      %v1002 = vpop.f32.mrb[0].mxu0
      %1003 = vmatprep.mubr.f32.mxu0 0.0
      %1004 = vmatmul.mubr.f32.gmra.mrb[0].mxu0 %v690
      %v1005 = vpop.f32.mrb[0].mxu0
      %v1006 = vadd.f32 0.0, %v1005
      %v1007 = vpop.f32.mrb[0].mxu0
      %1008 = vmatprep.mubr.f32.mxu0 0.0
      %1009 = vmatmul.mubr.f32.gmra.mrb[0].mxu0 %v693
      %v1010 = vpop.f32.mrb[0].mxu0
      %v1011 = vadd.f32 0.0, %v1010
      %v1012 = vpop.f32.mrb[0].mxu0
      %1013 = vmatprep.mubr.f32.mxu0 0.0
      %1014 = vmatmul.mubr.f32.gmra.mrb[0].mxu0 %v696
      %v1015 = vpop.f32.mrb[0].mxu0
      %v1016 = vadd.f32 0.0, %v1015
      %v1017 = vpop.f32.mrb[0].mxu0
      %1018 = vmatprep.mubr.f32.mxu0 0.0
      %1019 = vmatmul.mubr.f32.gmra.mrb[0].mxu0 %v699
      %v1020 = vpop.f32.mrb[0].mxu0
      %v1021 = vadd.f32 0.0, %v1020
      %v1022 = vpop.f32.mrb[0].mxu0
      %1023 = vmatprep.mubr.f32.mxu0 0.0
      %1024 = vmatmul.mubr.f32.gmra.mrb[0].mxu0 %v702
      %v1025 = vpop.f32.mrb[0].mxu0
      %v1026 = vadd.f32 0.0, %v1025
      %v1027 = vpop.f32.mrb[0].mxu0
      %1028 = vmatprep.mubr.f32.mxu0 0.0
      %1029 = vmatmul.mubr.f32.gmra.mrb[0].mxu0 %v705
      %v1030 = vpop.f32.mrb[0].mxu0
      %v1031 = vadd.f32 0.0, %v1030
      %v1032 = vpop.f32.mrb[0].mxu0
      %1033 = vmatprep.mubr.f32.mxu0 0.0
      %1034 = vmatmul.mubr.f32.gmra.mrb[0].mxu0 %v708
      %v1035 = vpop.f32.mrb[0].mxu0
      %v1036 = vadd.f32 0.0, %v1035
      %v1037 = vpop.f32.mrb[0].mxu0
      %1038 = vmatprep.mubr.f32.mxu0 0.0
      %1039 = vmatmul.mubr.f32.gmra.mrb[0].mxu0 %v711
      %v1040 = vpop.f32.mrb[0].mxu0
      %v1041 = vadd.f32 0.0, %v1040
      %v1042 = vpop.f32.mrb[0].mxu0
      %1043 = vmatprep.mubr.f32.mxu0 0.0
      %1044 = vmatmul.mubr.f32.gmra.mrb[0].mxu0 %v714
      %v1045 = vpop.f32.mrb[0].mxu0
      %v1046 = vadd.f32 0.0, %v1045
      %v1047 = vpop.f32.mrb[0].mxu0
      %1048 = vmatprep.mubr.f32.mxu0 0.0
      %1049 = vmatmul.mubr.f32.gmra.mrb[0].mxu0 %v717
      %v1050 = vpop.f32.mrb[0].mxu0
      %v1051 = vadd.f32 0.0, %v1050
      %v1052 = vpop.f32.mrb[0].mxu0
      %1053 = vmatprep.mubr.f32.mxu0 0.0
      %1054 = vmatmul.mubr.f32.gmra.mrb[0].mxu0 %v720
      %v1055 = vpop.f32.mrb[0].mxu0
      %v1056 = vadd.f32 0.0, %v1055
      %v1057 = vpop.f32.mrb[0].mxu0
      %1058 = vmatprep.mubr.f32.mxu0 0.0
      %1059 = vmatmul.mubr.f32.gmra.mrb[0].mxu0 %v723
      %v1060 = vpop.f32.mrb[0].mxu0
      %v1061 = vadd.f32 0.0, %v1060
      %v1062 = vpop.f32.mrb[0].mxu0
      %1063 = vmatprep.mubr.f32.mxu0 0.0
      %1064 = vmatmul.mubr.f32.gmra.mrb[0].mxu0 %v726
      %v1065 = vpop.f32.mrb[0].mxu0
      %v1066 = vadd.f32 0.0, %v1065
      %v1067 = vpop.f32.mrb[0].mxu0
      %1068 = vmatprep.mubr.f32.mxu0 0.0
      %1069 = vmatmul.mubr.f32.gmra.mrb[0].mxu0 %v729
      %v1070 = vpop.f32.mrb[0].mxu0
      %v1071 = vadd.f32 0.0, %v1070
      %v1072 = vpop.f32.mrb[0].mxu0
      %1073 = vmatprep.mubr.f32.mxu0 0.0
      %1074 = vmatmul.mubr.f32.gmra.mrb[0].mxu0 %v732
      %v1075 = vpop.f32.mrb[0].mxu0
      %v1076 = vadd.f32 0.0, %v1075
      %v1077 = vpop.f32.mrb[0].mxu0
      %1078 = vmatprep.mubr.f32.mxu0 0.0
      %1079 = vmatmul.mubr.f32.gmra.mrb[0].mxu0 %v735
      %v1080 = vpop.f32.mrb[0].mxu0
      %v1081 = vadd.f32 0.0, %v1080
      %v1082 = vpop.f32.mrb[0].mxu0
      %1083 = vmatprep.mubr.f32.mxu0 0.0
      %1084 = vmatmul.mubr.f32.gmra.mrb[0].mxu0 %v738
      %v1085 = vpop.f32.mrb[0].mxu0
      %v1086 = vadd.f32 0.0, %v1085
      %v1087 = vpop.f32.mrb[0].mxu0
      %1088 = vmatprep.mubr.f32.mxu0 0.0
      %1089 = vmatmul.mubr.f32.gmra.mrb[0].mxu0 %v741
      %v1090 = vpop.f32.mrb[0].mxu0
      %v1091 = vadd.f32 0.0, %v1090
      %v1092 = vpop.f32.mrb[0].mxu0
      %1093 = vmatprep.mubr.f32.mxu0 0.0
      %1094 = vmatmul.mubr.f32.gmra.mrb[0].mxu0 %v744
      %v1095 = vpop.f32.mrb[0].mxu0
      %v1096 = vadd.f32 0.0, %v1095
      %v1097 = vpop.f32.mrb[0].mxu0
      %1098 = vmatprep.mubr.f32.mxu0 0.0
      %1099 = vmatmul.mubr.f32.gmra.mrb[0].mxu0 %v747
      %v1100 = vpop.f32.mrb[0].mxu0
      %v1101 = vadd.f32 0.0, %v1100
      %v1102 = vpop.f32.mrb[0].mxu0
      %1103 = vmatprep.mubr.f32.mxu0 0.0
      %1104 = vmatmul.mubr.f32.gmra.mrb[0].mxu0 %v750
      %v1105 = vpop.f32.mrb[0].mxu0
      %v1106 = vadd.f32 0.0, %v1105
      %v1107 = vpop.f32.mrb[0].mxu0
      %1108 = vmatprep.mubr.f32.mxu0 0.0
      %1109 = vmatmul.mubr.f32.gmra.mrb[0].mxu0 %v753
      %v1110 = vpop.f32.mrb[0].mxu0
      %v1111 = vadd.f32 0.0, %v1110
      %v1112 = vpop.f32.mrb[0].mxu0
      %1113 = vmatprep.mubr.f32.mxu0 0.0
      %1114 = vmatmul.mubr.f32.gmra.mrb[0].mxu0 %v756
      %v1115 = vpop.f32.mrb[0].mxu0
      %v1116 = vadd.f32 0.0, %v1115
      %v1117 = vpop.f32.mrb[0].mxu0
      %1118 = vmatprep.mubr.f32.mxu0 0.0
      %1119 = vmatmul.mubr.f32.gmra.mrb[0].mxu0 %v759
      %v1120 = vpop.f32.mrb[0].mxu0
      %v1121 = vadd.f32 0.0, %v1120
      %v1122 = vpop.f32.mrb[0].mxu0
      %1123 = vmatprep.mubr.f32.mxu0 0.0
      %1124 = vmatmul.mubr.f32.gmra.mrb[0].mxu0 %v762
      %v1125 = vpop.f32.mrb[0].mxu0
      %v1126 = vadd.f32 0.0, %v1125
      %v1127 = vpop.f32.mrb[0].mxu0
      %1128 = vmatprep.mubr.f32.mxu0 0.0
      %1129 = vmatmul.mubr.f32.gmra.mrb[0].mxu0 %v765
      %v1130 = vpop.f32.mrb[0].mxu0
      %v1131 = vadd.f32 0.0, %v1130
      %v1132 = vpop.f32.mrb[0].mxu0
      %1133 = vmatprep.mubr.f32.mxu0 0.0
      %1134 = vmatmul.mubr.f32.gmra.mrb[0].mxu0 %v768
      %v1135 = vpop.f32.mrb[0].mxu0
      %v1136 = vadd.f32 0.0, %v1135
      %v1137 = vpop.f32.mrb[0].mxu0
      %1138 = vmatprep.mubr.f32.mxu0 0.0
      %1139 = vmatmul.mubr.f32.gmra.mrb[0].mxu0 %v771
      %v1140 = vpop.f32.mrb[0].mxu0
      %v1141 = vadd.f32 0.0, %v1140
      %v1142 = vpop.f32.mrb[0].mxu0
      %1143 = vmatprep.mubr.f32.mxu0 0.0
      %1144 = vmatmul.mubr.f32.gmra.mrb[0].mxu0 %v774
      %v1145 = vpop.f32.mrb[0].mxu0
      %v1146 = vadd.f32 0.0, %v1145
      %v1147 = vpop.f32.mrb[0].mxu0
      %1148 = vmatprep.mubr.f32.mxu0 0.0
      %1149 = vmatmul.mubr.f32.gmra.mrb[0].mxu0 %v777
      %v1150 = vpop.f32.mrb[0].mxu0
      %v1151 = vadd.f32 0.0, %v1150
      %v1152 = vpop.f32.mrb[0].mxu0
      %1153 = vmatprep.mubr.f32.mxu0 0.0
      %1154 = vmatmul.mubr.f32.gmra.mrb[0].mxu0 %v780
      %v1155 = vpop.f32.mrb[0].mxu0
      %v1156 = vadd.f32 0.0, %v1155
      %v1157 = vpop.f32.mrb[0].mxu0
      %1158 = vmatprep.mubr.f32.mxu0 0.0
      %1159 = vmatmul.mubr.f32.gmra.mrb[0].mxu0 %v783
      %v1160 = vpop.f32.mrb[0].mxu0
      %v1161 = vadd.f32 0.0, %v1160
      %v1162 = vpop.f32.mrb[0].mxu0
      %1163 = vmatprep.mubr.f32.mxu0 0.0
      %1164 = vmatmul.mubr.f32.gmra.mrb[0].mxu0 %v786
      %v1165 = vpop.f32.mrb[0].mxu0
      %v1166 = vadd.f32 0.0, %v1165
      %v1167 = vpop.f32.mrb[0].mxu0
      %1168 = vmatprep.mubr.f32.mxu0 0.0
      %1169 = vmatmul.mubr.f32.gmra.mrb[0].mxu0 %v789
      %v1170 = vpop.f32.mrb[0].mxu0
      %v1171 = vadd.f32 0.0, %v1170
      %v1172 = vpop.f32.mrb[0].mxu0
      %1173 = vmatprep.mubr.f32.mxu0 0.0
      %1174 = vmatmul.mubr.f32.gmra.mrb[0].mxu0 %v792
      %v1175 = vpop.f32.mrb[0].mxu0
      %v1176 = vadd.f32 0.0, %v1175
      %v1177 = vpop.f32.mrb[0].mxu0
      %1178 = vdwg.mxu0
      %vm1179 = vcmask 695296
      %1180 = vst.msk [vmem:[%s145] sm:$0xff] %vm1179, %v861
      %1181 = vst.msk [vmem:[%s145 + $0x8] sm:$0xff] %vm1179, %v866
      %1182 = vst.msk [vmem:[%s145 + $0x10] sm:$0xff] %vm1179, %v871
      %1183 = vst.msk [vmem:[%s145 + $0x18] sm:$0xff] %vm1179, %v876
      %1184 = vst.msk [vmem:[%s145 + $0x20] sm:$0xff] %vm1179, %v881
      %1185 = vst.msk [vmem:[%s145 + $0x28] sm:$0xff] %vm1179, %v886
      %1186 = vst.msk [vmem:[%s145 + $0x30] sm:$0xff] %vm1179, %v891
      %1187 = vst.msk [vmem:[%s145 + $0x38] sm:$0xff] %vm1179, %v896
      %1188 = vst.msk [vmem:[%s145 + $0x40] sm:$0xff] %vm1179, %v901
      %1189 = vst.msk [vmem:[%s145 + $0x48] sm:$0xff] %vm1179, %v906
      %1190 = vst.msk [vmem:[%s145 + $0x50] sm:$0xff] %vm1179, %v911
      %1191 = vst.msk [vmem:[%s145 + $0x58] sm:$0xff] %vm1179, %v916
      %1192 = vst.msk [vmem:[%s145 + $0x60] sm:$0xff] %vm1179, %v921
      %1193 = vst.msk [vmem:[%s145 + $0x68] sm:$0xff] %vm1179, %v926
      %1194 = vst.msk [vmem:[%s145 + $0x70] sm:$0xff] %vm1179, %v931
      %1195 = vst.msk [vmem:[%s145 + $0x78] sm:$0xff] %vm1179, %v936
      %1196 = vst.msk [vmem:[%s145 + $0x80] sm:$0xff] %vm1179, %v941
      %1197 = vst.msk [vmem:[%s145 + $0x88] sm:$0xff] %vm1179, %v946
      %1198 = vst.msk [vmem:[%s145 + $0x90] sm:$0xff] %vm1179, %v951
      %1199 = vst.msk [vmem:[%s145 + $0x98] sm:$0xff] %vm1179, %v956
      %1200 = vst.msk [vmem:[%s145 + $0xa0] sm:$0xff] %vm1179, %v961
      %1201 = vst.msk [vmem:[%s145 + $0xa8] sm:$0xff] %vm1179, %v966
      %1202 = vst.msk [vmem:[%s145 + $0xb0] sm:$0xff] %vm1179, %v971
      %1203 = vst.msk [vmem:[%s145 + $0xb8] sm:$0xff] %vm1179, %v976
      %1204 = vst.msk [vmem:[%s145 + $0xc0] sm:$0xff] %vm1179, %v981
      %1205 = vst.msk [vmem:[%s145 + $0xc8] sm:$0xff] %vm1179, %v986
      %1206 = vst.msk [vmem:[%s145 + $0xd0] sm:$0xff] %vm1179, %v991
      %1207 = vst.msk [vmem:[%s145 + $0xd8] sm:$0xff] %vm1179, %v996
      %1208 = vst.msk [vmem:[%s145 + $0xe0] sm:$0xff] %vm1179, %v1001
      %1209 = vst.msk [vmem:[%s145 + $0xe8] sm:$0xff] %vm1179, %v1006
      %1210 = vst.msk [vmem:[%s145 + $0xf0] sm:$0xff] %vm1179, %v1011
      %1211 = vst.msk [vmem:[%s145 + $0xf8] sm:$0xff] %vm1179, %v1016
      %1212 = vst.msk [vmem:[%s145 + $0x100] sm:$0xff] %vm1179, %v1021
      %1213 = vst.msk [vmem:[%s145 + $0x108] sm:$0xff] %vm1179, %v1026
      %1214 = vst.msk [vmem:[%s145 + $0x110] sm:$0xff] %vm1179, %v1031
      %1215 = vst.msk [vmem:[%s145 + $0x118] sm:$0xff] %vm1179, %v1036
      %1216 = vst.msk [vmem:[%s145 + $0x120] sm:$0xff] %vm1179, %v1041
      %1217 = vst.msk [vmem:[%s145 + $0x128] sm:$0xff] %vm1179, %v1046
      %1218 = vst.msk [vmem:[%s145 + $0x130] sm:$0xff] %vm1179, %v1051
      %1219 = vst.msk [vmem:[%s145 + $0x138] sm:$0xff] %vm1179, %v1056
      %1220 = vst.msk [vmem:[%s145 + $0x140] sm:$0xff] %vm1179, %v1061
      %1221 = vst.msk [vmem:[%s145 + $0x148] sm:$0xff] %vm1179, %v1066
      %1222 = vst.msk [vmem:[%s145 + $0x150] sm:$0xff] %vm1179, %v1071
      %1223 = vst.msk [vmem:[%s145 + $0x158] sm:$0xff] %vm1179, %v1076
      %1224 = vst.msk [vmem:[%s145 + $0x160] sm:$0xff] %vm1179, %v1081
      %1225 = vst.msk [vmem:[%s145 + $0x168] sm:$0xff] %vm1179, %v1086
      %1226 = vst.msk [vmem:[%s145 + $0x170] sm:$0xff] %vm1179, %v1091
      %1227 = vst.msk [vmem:[%s145 + $0x178] sm:$0xff] %vm1179, %v1096
      %1228 = vst.msk [vmem:[%s145 + $0x180] sm:$0xff] %vm1179, %v1101
      %1229 = vst.msk [vmem:[%s145 + $0x188] sm:$0xff] %vm1179, %v1106
      %1230 = vst.msk [vmem:[%s145 + $0x190] sm:$0xff] %vm1179, %v1111
      %1231 = vst.msk [vmem:[%s145 + $0x198] sm:$0xff] %vm1179, %v1116
      %1232 = vst.msk [vmem:[%s145 + $0x1a0] sm:$0xff] %vm1179, %v1121
      %1233 = vst.msk [vmem:[%s145 + $0x1a8] sm:$0xff] %vm1179, %v1126
      %1234 = vst.msk [vmem:[%s145 + $0x1b0] sm:$0xff] %vm1179, %v1131
      %1235 = vst.msk [vmem:[%s145 + $0x1b8] sm:$0xff] %vm1179, %v1136
      %1236 = vst.msk [vmem:[%s145 + $0x1c0] sm:$0xff] %vm1179, %v1141
      %1237 = vst.msk [vmem:[%s145 + $0x1c8] sm:$0xff] %vm1179, %v1146
      %1238 = vst.msk [vmem:[%s145 + $0x1d0] sm:$0xff] %vm1179, %v1151
      %1239 = vst.msk [vmem:[%s145 + $0x1d8] sm:$0xff] %vm1179, %v1156
      %1240 = vst.msk [vmem:[%s145 + $0x1e0] sm:$0xff] %vm1179, %v1161
      %1241 = vst.msk [vmem:[%s145 + $0x1e8] sm:$0xff] %vm1179, %v1166
      %1242 = vst.msk [vmem:[%s145 + $0x1f0] sm:$0xff] %vm1179, %v1171
      %1243 = vst.msk [vmem:[%s145 + $0x1f8] sm:$0xff] %vm1179, %v1176
      %s1244 = smul.u32 64, %s13
      %p1245 = scmp.lt.s32.totalorder %s1244, 127
      %s1246 = scalar_select %p1245, %s1244, 127
      %s1247 = smul.addr %s1246, 8
      %s1248 = scalar_lea.vmem %s2, %s1247
      // Predicated region
      $region29: #{tpu_custom_call.1} parent=27 // pred_check
        %p1249 = pneg %p78
      $region30: #{tpu_custom_call.1} parent=27 // pred_check_branch
        %1251 = sbr.rel (%p1249) target = $region32
      $region31: #{tpu_custom_call.1} parent=27 // pred_region
        %s1252 = smul.u32 64, %s13
      $region32: #{tpu_custom_call.1} parent=27 // pred_fallthru
        _
    $region28: #{tpu_custom_call.1} parent=5 // pred_fallthru
      _
    %p1253 = scmp.le.s32.totalorder 2, %s8
    // Predicated region
    $region33: #{tpu_custom_call.1} parent=5 // pred_check
      %p1254 = pneg %p1253
    $region34: #{tpu_custom_call.1} parent=5 // pred_check_branch
      %1256 = sbr.rel (%p1254) target = $region36
    $region35: #{tpu_custom_call.1} parent=5 // pred_region
      %s1257 = ssub.s32 %s8, 2
      // Predicated region
      $region37: #{tpu_custom_call.1} parent=35 // pred_check
        %p1258 = pneg %p84
      $region38: #{tpu_custom_call.1} parent=35 // pred_check_branch
        %1260 = sbr.rel (%p1258) target = $region40
      $region39: #{tpu_custom_call.1} parent=35 // pred_region
        %s1261 = smul.u32 64, %s14
        %p1262 = scmp.lt.s32.totalorder %s1261, 127
        %s1263 = scalar_select %p1262, %s1261, 127
        %s1264 = smul.addr %s1263, 8
        %s1265 = scalar_lea.vmem %s2, %s1264
      $region40: #{tpu_custom_call.1} parent=35 // pred_fallthru
        _
    $region36: #{tpu_custom_call.1} parent=5 // pred_fallthru
      _
  $region6: #{tpu_custom_call.1} parent=0 // loop_footer
    %s12 = sadd.s32 1, %s8
  $region7: #{tpu_custom_call.1} parent=0 // loop_footer_branch
    %7 = sbr.rel target = $region3
  $region8: #{tpu_custom_call.1} parent=0 // loop_exit
    _

</llo_original>
